<compile_context>
chip_gen: v7x
topology: tpu7x:2x2x1
jax: 0.10.0
libtpu: 0.0.40
codegen_flags: <defaults>
</compile_context>

<pallas_src>
import functools

import jax
import jax.numpy as jnp
from jax import lax
from jax.experimental import pallas as pl
from jax.experimental.pallas import tpu as pltpu

EPS = 1e-10


def _mnll_kernel(logits_ref, pred_ref, gt_ref, out_ref, *, num_modes, k_per_mode,
                 batch_size):
    """One batch tile of the MNLL trajectory loss.

    logits_ref : (M, TB)    mode logits, batch on lanes (tiny, wrapper-transposed)
    pred_ref   : (TB, M*K)  trajectories in their native layout (K = T*D)
    gt_ref     : (TB, K)    ground truth in its native layout
    out_ref    : (1, TB)    per-batch-item loss (lane-dense; 0 past batch_size)
    """
    M, K = num_modes, k_per_mode
    MK = M * K
    TB = pred_ref.shape[0]

    # ---- softmax over modes (sublane axis; batch stays lane-parallel) ----
    lg = logits_ref[...].astype(jnp.float32)                             # (M, TB)
    mx = jnp.max(lg, axis=0, keepdims=True)                              # (1, TB)
    ex = jnp.exp(lg - mx)                                                # (M, TB)
    p = ex / jnp.sum(ex, axis=0, keepdims=True)                          # (M, TB)
    neg_entropy = jnp.sum(p * jnp.log(p + EPS), axis=0, keepdims=True)   # (1, TB)

    # ---- per-mode squared L2 distance in the packed native layout ----
    pred = pred_ref[...].astype(jnp.float32)                             # (TB, MK)
    gt = gt_ref[...].astype(jnp.float32)                                 # (TB, K)
    gt_tiled = jnp.concatenate([gt] * M, axis=1)                         # (TB, MK)
    d = pred - gt_tiled
    sq = d * d                                                           # (TB, MK)

    # Segmented sum over each mode's K lanes as a matmul with a constant 0/1
    # selector -> runs on the idle MXU instead of per-mode cross-lane reductions.
    # The f32 operand is split into three exact bf16 pieces so the result matches
    # an f32 reduction to ~1e-7 relative error.
    j = lax.broadcasted_iota(jnp.int32, (MK, 128), 0)
    c = lax.broadcasted_iota(jnp.int32, (MK, 128), 1)
    sel = ((j >= c * K) & (j < (c + 1) * K)).astype(jnp.bfloat16)        # (MK, 128)

    x1 = sq.astype(jnp.bfloat16)
    r1 = sq - x1.astype(jnp.float32)
    x2 = r1.astype(jnp.bfloat16)
    r2 = r1 - x2.astype(jnp.float32)
    x3 = r2.astype(jnp.bfloat16)

    def _bdot(x):
        return jnp.dot(x, sel, preferred_element_type=jnp.float32)

    l2_wide = _bdot(x1) + _bdot(x2) + _bdot(x3)                          # (TB, 128)

    # Fully (8,128)-aligned transpose of the small per-item result so the
    # min / select / combine stage runs batch-on-lanes.
    l2_t = jnp.transpose(l2_wide)                                        # (128, TB)

    # Running min over modes; strict '<' keeps the FIRST minimum on ties,
    # matching torch.argmin / jnp.argmin.
    min_l2 = l2_t[0:1, :]
    p_best = p[0:1, :]
    for m in range(1, M):
        l2_m = l2_t[m:m + 1, :]
        better = l2_m < min_l2
        min_l2 = jnp.where(better, l2_m, min_l2)
        p_best = jnp.where(better, p[m:m + 1, :], p_best)

    nll = -jnp.log(p_best + EPS)                                         # (1, TB)
    v = neg_entropy + nll + min_l2                                       # (1, TB)

    # Mask ragged / padded batch columns (OOB lanes hold undefined data; they are
    # per-lane isolated, and their writes are dropped by Pallas anyway).
    col = lax.broadcasted_iota(jnp.int32, (1, TB), 1) + pl.program_id(0) * TB
    out_ref[...] = jnp.where(col < batch_size, v, 0.0)


def _pick_tile_b(num_rows, mk, target_bytes=3 * 1024 * 1024, max_tile=8192):
    """Batch tile (multiple of 128): ~3 MiB of trajectory data per block, capped so
    the grid has >= 2 steps whenever the batch allows (v7x has 2 TensorCores).
    In-kernel f32 temporaries are a small multiple of the block, keeping the
    per-step footprint well under v7x's 64 MiB VMEM (and the 48 MiB scoped limit)."""
    t = max(128, (target_bytes // max(1, mk * 4)) // 128 * 128)
    t = min(t, max_tile)
    half = -(-num_rows // 2)            # ceil(rows / 2)
    half = -(-half // 128) * 128        # rounded up to a lane multiple
    return int(min(t, max(128, half)))


def _mnll_trajectory_loss_impl(mode_logits, predicted_trajectory, ground_truth,
                               tile_b=None):
    B, M, T, D = predicted_trajectory.shape
    assert M <= 128, "kernel assumes num_modes <= 128"
    K = T * D
    MK = M * K

    # Native layouts: free reshapes on the big tensors + a transpose of the tiny
    # (B, M) logits.  No extra HBM pass over the trajectory tensor.
    pred2 = predicted_trajectory.reshape(B, MK)
    gt2 = ground_truth.reshape(B, K)
    logits_t = jnp.transpose(mode_logits)                  # (M, B)

    # Only a sub-128 batch gets padded (negligible cost); larger non-aligned
    # batches use a ragged last block instead.
    if B < 128:
        pad = 128 - B
        pred2 = jnp.pad(pred2, ((0, pad), (0, 0)))
        gt2 = jnp.pad(gt2, ((0, pad), (0, 0)))
        logits_t = jnp.pad(logits_t, ((0, 0), (0, pad)))
    rows = pred2.shape[0]

    if tile_b is None:
        tile_b = _pick_tile_b(rows, MK)
    grid = (pl.cdiv(rows, tile_b),)

    in_itemsize = predicted_trajectory.dtype.itemsize
    cost = pl.CostEstimate(
        flops=int(rows) * (3 * MK + 8 * M),
        transcendentals=int(rows) * (2 * M + 2),
        bytes_accessed=int(rows) * (MK + K) * in_itemsize
        + int(rows) * M * mode_logits.dtype.itemsize
        + int(rows) * 4,
    )

    per_item = pl.pallas_call(
        functools.partial(_mnll_kernel, num_modes=M, k_per_mode=K, batch_size=B),
        out_shape=jax.ShapeDtypeStruct((1, rows), jnp.float32),
        grid=grid,
        in_specs=[
            pl.BlockSpec((M, tile_b), lambda i: (0, i)),      # logits_t (M, rows)
            pl.BlockSpec((tile_b, MK), lambda i: (i, 0)),     # pred     (rows, MK)
            pl.BlockSpec((tile_b, K), lambda i: (i, 0)),      # gt       (rows, K)
        ],
        out_specs=pl.BlockSpec((1, tile_b), lambda i: (0, i)),
        compiler_params=pltpu.CompilerParams(
            dimension_semantics=("parallel",),
            vmem_limit_bytes=48 * 1024 * 1024,
        ),
        cost_estimate=cost,
    )(logits_t, pred2, gt2)

    # Tiny final reduction in plain JAX (masked / dropped columns contribute 0).
    return jnp.sum(per_item) / float(B)


@jax.jit
def mnll_trajectory_loss(mode_logits, predicted_trajectory, ground_truth):
    return _mnll_trajectory_loss_impl(mode_logits, predicted_trajectory, ground_truth)


def _reference_loss(mode_logits, predicted_trajectory, ground_truth):
    # Pure-JAX reference mirroring the PyTorch forward exactly.
    p = jax.nn.softmax(mode_logits.astype(jnp.float32), axis=1)
    B = predicted_trajectory.shape[0]
    entropy_per_item = jnp.sum(-p * jnp.log(p + EPS), axis=1)
    entropy_loss = jnp.mean(-entropy_per_item)
    pred = predicted_trajectory.astype(jnp.float32)
    gt = ground_truth.astype(jnp.float32)
    diff = pred - gt[:, None]
    l2 = jnp.sum(diff ** 2, axis=(-1, -2))                     # (B, M)
    idx = jnp.argmin(l2, axis=1)
    p_closest = p[jnp.arange(B), idx]
    nll = -jnp.log(p_closest + EPS)
    best = pred[jnp.arange(B), idx]
    reg = jnp.sum((best - gt) ** 2, axis=(-1, -2))
    return entropy_loss + jnp.mean(nll + reg)


if __name__ == "__main__":
    # Test 1: small shapes implied by the module (single padded block).
    k1, k2, k3 = jax.random.split(jax.random.PRNGKey(0), 3)
    B, M, T, D = 4, 6, 8, 2
    mode_logits = jax.random.normal(k1, (B, M), dtype=jnp.float32)
    predicted_trajectory = jax.random.normal(k2, (B, M, T, D), dtype=jnp.float32)
    ground_truth = jax.random.normal(k3, (B, T, D), dtype=jnp.float32)

    loss = jax.block_until_ready(
        mnll_trajectory_loss(mode_logits, predicted_trajectory, ground_truth))
    ref = _reference_loss(mode_logits, predicted_trajectory, ground_truth)
    assert jnp.allclose(loss, ref, rtol=1e-5, atol=1e-5), (loss, ref)

    # Test 2: non-tile-multiple batch -> multi-step ragged grid (no padding).
    k4, k5, k6 = jax.random.split(jax.random.PRNGKey(1), 3)
    B2, M2, T2, D2 = 300, 6, 10, 2
    logits2 = jax.random.normal(k4, (B2, M2), dtype=jnp.float32)
    pred2 = jax.random.normal(k5, (B2, M2, T2, D2), dtype=jnp.float32)
    gt2 = jax.random.normal(k6, (B2, T2, D2), dtype=jnp.float32)

    loss2 = jax.block_until_ready(mnll_trajectory_loss(logits2, pred2, gt2))
    ref2 = _reference_loss(logits2, pred2, gt2)
    # Slightly looser: partial-sum order differs from a single jnp.mean.
    assert jnp.allclose(loss2, ref2, rtol=1e-4, atol=1e-3), (loss2, ref2)

    print("KERNEL_OK")
</pallas_src>

<mosaic_0001>
module attributes {stable_mosaic.version = 11 : i64} {
  func.func @_mnll_kernel(%arg0: i32, %arg1: memref<6x128xf32, #tpu.memory_space<vmem>>, %arg2: memref<128x96xf32, #tpu.memory_space<vmem>>, %arg3: memref<128x16xf32, #tpu.memory_space<vmem>>, %arg4: memref<1x128xf32, #tpu.memory_space<vmem>>) attributes {dimension_semantics = [#tpu.dimension_semantics<parallel>], iteration_bounds = array<i64: 1>, scalar_prefetch = 0 : i64, scratch_operands = 0 : i64, tpu.core_type = #tpu.core_type<tc>, window_params = [{transform_indices = @transform_0, window_bounds = array<i64: 6, 128>}, {transform_indices = @transform_1, window_bounds = array<i64: 128, 96>}, {transform_indices = @transform_2, window_bounds = array<i64: 128, 16>}, {transform_indices = @transform_3, window_bounds = array<i64: 1, 128>}]} {
    %c0 = arith.constant 0 : index
    %c0_0 = arith.constant 0 : index
    %0 = vector.load %arg1[%c0, %c0_0] : memref<6x128xf32, #tpu.memory_space<vmem>>, vector<6x128xf32>
    %cst = arith.constant dense<0xFF800000> : vector<128xf32>
    %1 = vector.multi_reduction <maximumf>, %0, %cst [0] : vector<6x128xf32> to vector<128xf32>
    %2 = vector.shape_cast %1 : vector<128xf32> to vector<1x128xf32>
    %3 = vector.broadcast %2 : vector<1x128xf32> to vector<6x128xf32>
    %4 = arith.subf %0, %3 : vector<6x128xf32>
    %5 = math.exp %4 : vector<6x128xf32>
    %cst_1 = arith.constant dense<0.000000e+00> : vector<128xf32>
    %6 = vector.multi_reduction <add>, %5, %cst_1 [0] : vector<6x128xf32> to vector<128xf32>
    %7 = vector.shape_cast %6 : vector<128xf32> to vector<1x128xf32>
    %8 = vector.broadcast %7 : vector<1x128xf32> to vector<6x128xf32>
    %9 = arith.divf %5, %8 : vector<6x128xf32>
    %cst_2 = arith.constant 1.000000e-10 : f32
    %10 = vector.broadcast %cst_2 : f32 to vector<6x128xf32>
    %11 = arith.addf %9, %10 : vector<6x128xf32>
    %12 = math.log %11 : vector<6x128xf32>
    %13 = arith.mulf %9, %12 : vector<6x128xf32>
    %cst_3 = arith.constant dense<0.000000e+00> : vector<128xf32>
    %14 = vector.multi_reduction <add>, %13, %cst_3 [0] : vector<6x128xf32> to vector<128xf32>
    %15 = vector.shape_cast %14 : vector<128xf32> to vector<1x128xf32>
    %c0_4 = arith.constant 0 : index
    %c0_5 = arith.constant 0 : index
    %16 = vector.load %arg2[%c0_4, %c0_5] : memref<128x96xf32, #tpu.memory_space<vmem>>, vector<128x96xf32>
    %c0_6 = arith.constant 0 : index
    %c0_7 = arith.constant 0 : index
    %17 = vector.load %arg3[%c0_6, %c0_7] : memref<128x16xf32, #tpu.memory_space<vmem>>, vector<128x16xf32>
    %18 = tpu.concatenate %17, %17, %17, %17, %17, %17 in 1 : vector<128x16xf32>, vector<128x16xf32>, vector<128x16xf32>, vector<128x16xf32>, vector<128x16xf32>, vector<128x16xf32> -> vector<128x96xf32>
    %19 = arith.subf %16, %18 : vector<128x96xf32>
    %20 = arith.mulf %19, %19 : vector<128x96xf32>
    %21 = tpu.iota {dimensions = array<i32: 0>} : vector<96x128xi32>
    %22 = tpu.iota {dimensions = array<i32: 1>} : vector<96x128xi32>
    %c16_i32 = arith.constant 16 : i32
    %23 = vector.broadcast %c16_i32 : i32 to vector<96x128xi32>
    %24 = arith.muli %22, %23 : vector<96x128xi32>
    %25 = arith.cmpi sge, %21, %24 : vector<96x128xi32>
    %c1_i32 = arith.constant 1 : i32
    %26 = vector.broadcast %c1_i32 : i32 to vector<96x128xi32>
    %27 = arith.addi %22, %26 : vector<96x128xi32>
    %c16_i32_8 = arith.constant 16 : i32
    %28 = vector.broadcast %c16_i32_8 : i32 to vector<96x128xi32>
    %29 = arith.muli %27, %28 : vector<96x128xi32>
    %30 = arith.cmpi slt, %21, %29 : vector<96x128xi32>
    %31 = arith.andi %25, %30 : vector<96x128xi1>
    %32 = arith.extui %31 : vector<96x128xi1> to vector<96x128xi32>
    %33 = arith.sitofp %32 : vector<96x128xi32> to vector<96x128xf32>
    %34 = arith.truncf %33 : vector<96x128xf32> to vector<96x128xbf16>
    %35 = arith.truncf %20 : vector<128x96xf32> to vector<128x96xbf16>
    %36 = arith.extf %35 : vector<128x96xbf16> to vector<128x96xf32>
    %37 = arith.subf %20, %36 : vector<128x96xf32>
    %38 = arith.truncf %37 : vector<128x96xf32> to vector<128x96xbf16>
    %39 = arith.extf %38 : vector<128x96xbf16> to vector<128x96xf32>
    %40 = arith.subf %37, %39 : vector<128x96xf32>
    %41 = arith.truncf %40 : vector<128x96xf32> to vector<128x96xbf16>
    %cst_9 = arith.constant dense<0.000000e+00> : vector<128x128xf32>
    %42 = tpu.matmul %35, %34, %cst_9 {dimension_numbers = #tpu.dot_dimension_numbers<[1], [0], [0], [1], [0, 0, 1, 1], [], []>} : vector<128x96xbf16>, vector<96x128xbf16>, vector<128x128xf32> -> vector<128x128xf32>
    %cst_10 = arith.constant dense<0.000000e+00> : vector<128x128xf32>
    %43 = tpu.matmul %38, %34, %cst_10 {dimension_numbers = #tpu.dot_dimension_numbers<[1], [0], [0], [1], [0, 0, 1, 1], [], []>} : vector<128x96xbf16>, vector<96x128xbf16>, vector<128x128xf32> -> vector<128x128xf32>
    %44 = arith.addf %42, %43 : vector<128x128xf32>
    %cst_11 = arith.constant dense<0.000000e+00> : vector<128x128xf32>
    %45 = tpu.matmul %41, %34, %cst_11 {dimension_numbers = #tpu.dot_dimension_numbers<[1], [0], [0], [1], [0, 0, 1, 1], [], []>} : vector<128x96xbf16>, vector<96x128xbf16>, vector<128x128xf32> -> vector<128x128xf32>
    %46 = arith.addf %44, %45 : vector<128x128xf32>
    %47 = tpu.transpose %46, [1, 0] : vector<128x128xf32> -> vector<128x128xf32>
    %48 = vector.extract_strided_slice %47 {offsets = [0, 0], sizes = [1, 128], strides = [1, 1]} : vector<128x128xf32> to vector<1x128xf32>
    %49 = vector.extract_strided_slice %9 {offsets = [0, 0], sizes = [1, 128], strides = [1, 1]} : vector<6x128xf32> to vector<1x128xf32>
    %50 = vector.extract_strided_slice %47 {offsets = [1, 0], sizes = [1, 128], strides = [1, 1]} : vector<128x128xf32> to vector<1x128xf32>
    %51 = arith.cmpf olt, %50, %48 : vector<1x128xf32>
    %52 = arith.select %51, %50, %48 : vector<1x128xi1>, vector<1x128xf32>
    %53 = vector.extract_strided_slice %9 {offsets = [1, 0], sizes = [1, 128], strides = [1, 1]} : vector<6x128xf32> to vector<1x128xf32>
    %54 = arith.select %51, %53, %49 : vector<1x128xi1>, vector<1x128xf32>
    %55 = vector.extract_strided_slice %47 {offsets = [2, 0], sizes = [1, 128], strides = [1, 1]} : vector<128x128xf32> to vector<1x128xf32>
    %56 = arith.cmpf olt, %55, %52 : vector<1x128xf32>
    %57 = arith.select %56, %55, %52 : vector<1x128xi1>, vector<1x128xf32>
    %58 = vector.extract_strided_slice %9 {offsets = [2, 0], sizes = [1, 128], strides = [1, 1]} : vector<6x128xf32> to vector<1x128xf32>
    %59 = arith.select %56, %58, %54 : vector<1x128xi1>, vector<1x128xf32>
    %60 = vector.extract_strided_slice %47 {offsets = [3, 0], sizes = [1, 128], strides = [1, 1]} : vector<128x128xf32> to vector<1x128xf32>
    %61 = arith.cmpf olt, %60, %57 : vector<1x128xf32>
    %62 = arith.select %61, %60, %57 : vector<1x128xi1>, vector<1x128xf32>
    %63 = vector.extract_strided_slice %9 {offsets = [3, 0], sizes = [1, 128], strides = [1, 1]} : vector<6x128xf32> to vector<1x128xf32>
    %64 = arith.select %61, %63, %59 : vector<1x128xi1>, vector<1x128xf32>
    %65 = vector.extract_strided_slice %47 {offsets = [4, 0], sizes = [1, 128], strides = [1, 1]} : vector<128x128xf32> to vector<1x128xf32>
    %66 = arith.cmpf olt, %65, %62 : vector<1x128xf32>
    %67 = arith.select %66, %65, %62 : vector<1x128xi1>, vector<1x128xf32>
    %68 = vector.extract_strided_slice %9 {offsets = [4, 0], sizes = [1, 128], strides = [1, 1]} : vector<6x128xf32> to vector<1x128xf32>
    %69 = arith.select %66, %68, %64 : vector<1x128xi1>, vector<1x128xf32>
    %70 = vector.extract_strided_slice %47 {offsets = [5, 0], sizes = [1, 128], strides = [1, 1]} : vector<128x128xf32> to vector<1x128xf32>
    %71 = arith.cmpf olt, %70, %67 : vector<1x128xf32>
    %72 = arith.select %71, %70, %67 : vector<1x128xi1>, vector<1x128xf32>
    %73 = vector.extract_strided_slice %9 {offsets = [5, 0], sizes = [1, 128], strides = [1, 1]} : vector<6x128xf32> to vector<1x128xf32>
    %74 = arith.select %71, %73, %69 : vector<1x128xi1>, vector<1x128xf32>
    %cst_12 = arith.constant 1.000000e-10 : f32
    %75 = vector.broadcast %cst_12 : f32 to vector<1x128xf32>
    %76 = arith.addf %74, %75 : vector<1x128xf32>
    %77 = math.log %76 : vector<1x128xf32>
    %cst_13 = arith.constant 0.000000e+00 : f32
    %78 = vector.broadcast %cst_13 : f32 to vector<1x128xf32>
    %79 = arith.subf %78, %77 : vector<1x128xf32>
    %80 = arith.addf %15, %79 : vector<1x128xf32>
    %81 = arith.addf %80, %72 : vector<1x128xf32>
    %82 = tpu.iota {dimensions = array<i32: 1>} : vector<1x128xi32>
    %c128_i32 = arith.constant 128 : i32
    %83 = arith.muli %arg0, %c128_i32 : i32
    %84 = vector.broadcast %83 : i32 to vector<1x128xi32>
    %85 = arith.addi %82, %84 : vector<1x128xi32>
    %c4_i32 = arith.constant 4 : i32
    %86 = vector.broadcast %c4_i32 : i32 to vector<1x128xi32>
    %87 = arith.cmpi slt, %85, %86 : vector<1x128xi32>
    %cst_14 = arith.constant 0.000000e+00 : f32
    %88 = vector.broadcast %cst_14 : f32 to vector<1x128xf32>
    %89 = arith.select %87, %81, %88 : vector<1x128xi1>, vector<1x128xf32>
    %c0_15 = arith.constant 0 : index
    %c0_16 = arith.constant 0 : index
    %90 = vector.load %arg4[%c0_15, %c0_16] : memref<1x128xf32, #tpu.memory_space<vmem>>, vector<1x128xf32>
    tpu.vector_store %arg4[%c0_15, %c0_16], %89 {strides = array<i32>} : memref<1x128xf32, #tpu.memory_space<vmem>>, vector<1x128xf32>,
    return
  }
  func.func @transform_0(%arg0: i32) -> (i32, i32) {
    %c0_i32 = arith.constant 0 : i32
    %c0_i32_0 = arith.constant 0 : i32
    return %c0_i32, %arg0 : i32, i32
  }
  func.func @transform_1(%arg0: i32) -> (i32, i32) {
    %c0_i32 = arith.constant 0 : i32
    %c0_i32_0 = arith.constant 0 : i32
    return %arg0, %c0_i32 : i32, i32
  }
  func.func @transform_2(%arg0: i32) -> (i32, i32) {
    %c0_i32 = arith.constant 0 : i32
    %c0_i32_0 = arith.constant 0 : i32
    return %arg0, %c0_i32 : i32, i32
  }
  func.func @transform_3(%arg0: i32) -> (i32, i32) {
    %c0_i32 = arith.constant 0 : i32
    %c0_i32_0 = arith.constant 0 : i32
    return %c0_i32, %arg0 : i32, i32
  }
}

</mosaic_0001>

<llo_original>
// kernel: mnll_trajectory_loss.1
$region0: #{mnll_trajectory_loss.1}
  #allocation0 [shape = 'u32[]', space=smem, size = 0x4, offset = 0x4, fixed_abs, tag = 'smem constant byte address 0x4 - core index']
  #allocation1 [shape = 'u32[144,128]{1,0:T(1,128)}', space=vmem, size = 0x12000, scoped, tag = 'internal scratch']
  %s0 = inlined_call_operand.vmem [shape: f32[6,128], index: 0, kind: input, shape index: {}]
  %s1 = inlined_call_operand.vmem [shape: f32[128,96], index: 1, kind: input, shape index: {}]
  %s2 = inlined_call_operand.vmem [shape: f32[128,16], index: 2, kind: input, shape index: {}]
  %s3 = inlined_call_operand.vmem [shape: f32[1,128], index: 3, kind: output, shape index: {}]
  %s4 = sld [smem:[#allocation0]]
  $region22: #{mnll_trajectory_loss.1} parent=0
    _
  %s6 = ssub.s32 1, %s4
  %s7 = scalar_select 0, %s6, %s4
  // Predicated region
  $region2: #{mnll_trajectory_loss.1} parent=0 // pred_check
    _
  $region3: #{mnll_trajectory_loss.1} parent=0 // pred_check_branch
    %9 = sbr.rel (0) target = $region5
  $region4: #{mnll_trajectory_loss.1} parent=0 // pred_region
    _
  $region5: #{mnll_trajectory_loss.1} parent=0 // pred_fallthru
    _
  // Predicated region
  $region6: #{mnll_trajectory_loss.1} parent=0 // pred_check
    _
  $region7: #{mnll_trajectory_loss.1} parent=0 // pred_check_branch
    %11 = sbr.rel (0) target = $region9
  $region8: #{mnll_trajectory_loss.1} parent=0 // pred_region
    _
  $region9: #{mnll_trajectory_loss.1} parent=0 // pred_fallthru
    _
  // Predicated region
  $region10: #{mnll_trajectory_loss.1} parent=0 // pred_check
    _
  $region11: #{mnll_trajectory_loss.1} parent=0 // pred_check_branch
    %13 = sbr.rel (0) target = $region13
  $region12: #{mnll_trajectory_loss.1} parent=0 // pred_region
    _
  $region13: #{mnll_trajectory_loss.1} parent=0 // pred_fallthru
    _
  %v15 = vld [vmem:[%s0] sm:$0x3f]
  %vm16 = vcmask 1045504
  %v17 = vsel %vm16, %v15, -inf
  %v18 = vrot.slane %v17, 4
  %v19 = vmax.f32 %v17, %v18
  %v20 = vrot.slane %v19, 2
  %v21 = vmax.f32 %v19, %v20
  %v22 = vrot.slane %v21, 1
  %v23 = vmax.f32 %v21, %v22
  %v24 = vsub.f32 %v15, %v23
  %v25 = vmul.f32 %v24, 1.442695
  %v26 = vpow.pop %v25
  %v27 = vsel %vm16, %v26, 0.0
  %v28 = vrot.slane %v27, 4
  %v29 = vadd.f32 %v27, %v28
  %v30 = vrot.slane %v29, 2
  %v31 = vadd.f32 %v29, %v30
  %v32 = vrot.slane %v31, 1
  %v33 = vadd.f32 %v31, %v32
  %v34 = vrcp.pop %v33
  %v35 = vmul.f32 %v26, %v34
  %v36 = vadd.f32 %v35, 1e-10
  %v37 = vlog2.pop %v36
  %v38 = vmul.f32 %v37, 0.6931472
  %v39 = vmul.f32 %v35, %v38
  %v40 = vsel %vm16, %v39, 0.0
  %v41 = vrot.slane %v40, 4
  %v42 = vadd.f32 %v40, %v41
  %v43 = vrot.slane %v42, 2
  %v44 = vadd.f32 %v42, %v43
  %v45 = vrot.slane %v44, 1
  %v46 = vadd.f32 %v44, %v45
  %v47 = vld [vmem:[%s1] sm:$0xff]
  %v48 = vld [vmem:[%s1 + $0x8] sm:$0xff]
  %v49 = vld [vmem:[%s1 + $0x10] sm:$0xff]
  %v50 = vld [vmem:[%s1 + $0x18] sm:$0xff]
  %v51 = vld [vmem:[%s1 + $0x20] sm:$0xff]
  %v52 = vld [vmem:[%s1 + $0x28] sm:$0xff]
  %v53 = vld [vmem:[%s1 + $0x30] sm:$0xff]
  %v54 = vld [vmem:[%s1 + $0x38] sm:$0xff]
  %v55 = vld [vmem:[%s1 + $0x40] sm:$0xff]
  %v56 = vld [vmem:[%s1 + $0x48] sm:$0xff]
  %v57 = vld [vmem:[%s1 + $0x50] sm:$0xff]
  %v58 = vld [vmem:[%s1 + $0x58] sm:$0xff]
  %v59 = vld [vmem:[%s1 + $0x60] sm:$0xff]
  %v60 = vld [vmem:[%s1 + $0x68] sm:$0xff]
  %v61 = vld [vmem:[%s1 + $0x70] sm:$0xff]
  %v62 = vld [vmem:[%s1 + $0x78] sm:$0xff]
  %v63 = vld [vmem:[%s2] sm:$0xff]
  %v64 = vld [vmem:[%s2 + $0x8] sm:$0xff]
  %v65 = vld [vmem:[%s2 + $0x10] sm:$0xff]
  %v66 = vld [vmem:[%s2 + $0x18] sm:$0xff]
  %v67 = vld [vmem:[%s2 + $0x20] sm:$0xff]
  %v68 = vld [vmem:[%s2 + $0x28] sm:$0xff]
  %v69 = vld [vmem:[%s2 + $0x30] sm:$0xff]
  %v70 = vld [vmem:[%s2 + $0x38] sm:$0xff]
  %v71 = vld [vmem:[%s2 + $0x40] sm:$0xff]
  %v72 = vld [vmem:[%s2 + $0x48] sm:$0xff]
  %v73 = vld [vmem:[%s2 + $0x50] sm:$0xff]
  %v74 = vld [vmem:[%s2 + $0x58] sm:$0xff]
  %v75 = vld [vmem:[%s2 + $0x60] sm:$0xff]
  %v76 = vld [vmem:[%s2 + $0x68] sm:$0xff]
  %v77 = vld [vmem:[%s2 + $0x70] sm:$0xff]
  %v78 = vld [vmem:[%s2 + $0x78] sm:$0xff]
  %95 = vrot.lane.b32.xlu0 %v63, 16
  %v96 = vpop.permute.xlu0 %95
  %97 = vrot.lane.b32.xlu0 %v64, 16
  %v98 = vpop.permute.xlu0 %97
  %99 = vrot.lane.b32.xlu0 %v65, 16
  %v100 = vpop.permute.xlu0 %99
  %101 = vrot.lane.b32.xlu0 %v66, 16
  %v102 = vpop.permute.xlu0 %101
  %103 = vrot.lane.b32.xlu0 %v67, 16
  %v104 = vpop.permute.xlu0 %103
  %105 = vrot.lane.b32.xlu0 %v68, 16
  %v106 = vpop.permute.xlu0 %105
  %107 = vrot.lane.b32.xlu0 %v69, 16
  %v108 = vpop.permute.xlu0 %107
  %109 = vrot.lane.b32.xlu0 %v70, 16
  %v110 = vpop.permute.xlu0 %109
  %111 = vrot.lane.b32.xlu0 %v71, 16
  %v112 = vpop.permute.xlu0 %111
  %113 = vrot.lane.b32.xlu0 %v72, 16
  %v114 = vpop.permute.xlu0 %113
  %115 = vrot.lane.b32.xlu0 %v73, 16
  %v116 = vpop.permute.xlu0 %115
  %117 = vrot.lane.b32.xlu0 %v74, 16
  %v118 = vpop.permute.xlu0 %117
  %119 = vrot.lane.b32.xlu0 %v75, 16
  %v120 = vpop.permute.xlu0 %119
  %121 = vrot.lane.b32.xlu0 %v76, 16
  %v122 = vpop.permute.xlu0 %121
  %123 = vrot.lane.b32.xlu0 %v77, 16
  %v124 = vpop.permute.xlu0 %123
  %125 = vrot.lane.b32.xlu0 %v78, 16
  %v126 = vpop.permute.xlu0 %125
  %143 = vrot.lane.b32.xlu0 %v63, 32
  %v144 = vpop.permute.xlu0 %143
  %145 = vrot.lane.b32.xlu0 %v64, 32
  %v146 = vpop.permute.xlu0 %145
  %147 = vrot.lane.b32.xlu0 %v65, 32
  %v148 = vpop.permute.xlu0 %147
  %149 = vrot.lane.b32.xlu0 %v66, 32
  %v150 = vpop.permute.xlu0 %149
  %151 = vrot.lane.b32.xlu0 %v67, 32
  %v152 = vpop.permute.xlu0 %151
  %153 = vrot.lane.b32.xlu0 %v68, 32
  %v154 = vpop.permute.xlu0 %153
  %155 = vrot.lane.b32.xlu0 %v69, 32
  %v156 = vpop.permute.xlu0 %155
  %157 = vrot.lane.b32.xlu0 %v70, 32
  %v158 = vpop.permute.xlu0 %157
  %159 = vrot.lane.b32.xlu0 %v71, 32
  %v160 = vpop.permute.xlu0 %159
  %161 = vrot.lane.b32.xlu0 %v72, 32
  %v162 = vpop.permute.xlu0 %161
  %163 = vrot.lane.b32.xlu0 %v73, 32
  %v164 = vpop.permute.xlu0 %163
  %165 = vrot.lane.b32.xlu0 %v74, 32
  %v166 = vpop.permute.xlu0 %165
  %167 = vrot.lane.b32.xlu0 %v75, 32
  %v168 = vpop.permute.xlu0 %167
  %169 = vrot.lane.b32.xlu0 %v76, 32
  %v170 = vpop.permute.xlu0 %169
  %171 = vrot.lane.b32.xlu0 %v77, 32
  %v172 = vpop.permute.xlu0 %171
  %173 = vrot.lane.b32.xlu0 %v78, 32
  %v174 = vpop.permute.xlu0 %173
  %191 = vrot.lane.b32.xlu0 %v63, 48
  %v192 = vpop.permute.xlu0 %191
  %193 = vrot.lane.b32.xlu0 %v64, 48
  %v194 = vpop.permute.xlu0 %193
  %195 = vrot.lane.b32.xlu0 %v65, 48
  %v196 = vpop.permute.xlu0 %195
  %197 = vrot.lane.b32.xlu0 %v66, 48
  %v198 = vpop.permute.xlu0 %197
  %199 = vrot.lane.b32.xlu0 %v67, 48
  %v200 = vpop.permute.xlu0 %199
  %201 = vrot.lane.b32.xlu0 %v68, 48
  %v202 = vpop.permute.xlu0 %201
  %203 = vrot.lane.b32.xlu0 %v69, 48
  %v204 = vpop.permute.xlu0 %203
  %205 = vrot.lane.b32.xlu0 %v70, 48
  %v206 = vpop.permute.xlu0 %205
  %207 = vrot.lane.b32.xlu0 %v71, 48
  %v208 = vpop.permute.xlu0 %207
  %209 = vrot.lane.b32.xlu0 %v72, 48
  %v210 = vpop.permute.xlu0 %209
  %211 = vrot.lane.b32.xlu0 %v73, 48
  %v212 = vpop.permute.xlu0 %211
  %213 = vrot.lane.b32.xlu0 %v74, 48
  %v214 = vpop.permute.xlu0 %213
  %215 = vrot.lane.b32.xlu0 %v75, 48
  %v216 = vpop.permute.xlu0 %215
  %217 = vrot.lane.b32.xlu0 %v76, 48
  %v218 = vpop.permute.xlu0 %217
  %219 = vrot.lane.b32.xlu0 %v77, 48
  %v220 = vpop.permute.xlu0 %219
  %221 = vrot.lane.b32.xlu0 %v78, 48
  %v222 = vpop.permute.xlu0 %221
  %239 = vrot.lane.b32.xlu0 %v63, 64
  %v240 = vpop.permute.xlu0 %239
  %241 = vrot.lane.b32.xlu0 %v64, 64
  %v242 = vpop.permute.xlu0 %241
  %243 = vrot.lane.b32.xlu0 %v65, 64
  %v244 = vpop.permute.xlu0 %243
  %245 = vrot.lane.b32.xlu0 %v66, 64
  %v246 = vpop.permute.xlu0 %245
  %247 = vrot.lane.b32.xlu0 %v67, 64
  %v248 = vpop.permute.xlu0 %247
  %249 = vrot.lane.b32.xlu0 %v68, 64
  %v250 = vpop.permute.xlu0 %249
  %251 = vrot.lane.b32.xlu0 %v69, 64
  %v252 = vpop.permute.xlu0 %251
  %253 = vrot.lane.b32.xlu0 %v70, 64
  %v254 = vpop.permute.xlu0 %253
  %255 = vrot.lane.b32.xlu0 %v71, 64
  %v256 = vpop.permute.xlu0 %255
  %257 = vrot.lane.b32.xlu0 %v72, 64
  %v258 = vpop.permute.xlu0 %257
  %259 = vrot.lane.b32.xlu0 %v73, 64
  %v260 = vpop.permute.xlu0 %259
  %261 = vrot.lane.b32.xlu0 %v74, 64
  %v262 = vpop.permute.xlu0 %261
  %263 = vrot.lane.b32.xlu0 %v75, 64
  %v264 = vpop.permute.xlu0 %263
  %265 = vrot.lane.b32.xlu0 %v76, 64
  %v266 = vpop.permute.xlu0 %265
  %267 = vrot.lane.b32.xlu0 %v77, 64
  %v268 = vpop.permute.xlu0 %267
  %269 = vrot.lane.b32.xlu0 %v78, 64
  %v270 = vpop.permute.xlu0 %269
  %287 = vrot.lane.b32.xlu0 %v63, 80
  %v288 = vpop.permute.xlu0 %287
  %289 = vrot.lane.b32.xlu0 %v64, 80
  %v290 = vpop.permute.xlu0 %289
  %291 = vrot.lane.b32.xlu0 %v65, 80
  %v292 = vpop.permute.xlu0 %291
  %293 = vrot.lane.b32.xlu0 %v66, 80
  %v294 = vpop.permute.xlu0 %293
  %295 = vrot.lane.b32.xlu0 %v67, 80
  %v296 = vpop.permute.xlu0 %295
  %297 = vrot.lane.b32.xlu0 %v68, 80
  %v298 = vpop.permute.xlu0 %297
  %299 = vrot.lane.b32.xlu0 %v69, 80
  %v300 = vpop.permute.xlu0 %299
  %301 = vrot.lane.b32.xlu0 %v70, 80
  %v302 = vpop.permute.xlu0 %301
  %303 = vrot.lane.b32.xlu0 %v71, 80
  %v304 = vpop.permute.xlu0 %303
  %305 = vrot.lane.b32.xlu0 %v72, 80
  %v306 = vpop.permute.xlu0 %305
  %307 = vrot.lane.b32.xlu0 %v73, 80
  %v308 = vpop.permute.xlu0 %307
  %309 = vrot.lane.b32.xlu0 %v74, 80
  %v310 = vpop.permute.xlu0 %309
  %311 = vrot.lane.b32.xlu0 %v75, 80
  %v312 = vpop.permute.xlu0 %311
  %313 = vrot.lane.b32.xlu0 %v76, 80
  %v314 = vpop.permute.xlu0 %313
  %315 = vrot.lane.b32.xlu0 %v77, 80
  %v316 = vpop.permute.xlu0 %315
  %317 = vrot.lane.b32.xlu0 %v78, 80
  %v318 = vpop.permute.xlu0 %317
  %vm335 = vcmask 130048
  %v336 = vsel %vm335, %v63, %v96
  %v337 = vsel %vm335, %v64, %v98
  %v338 = vsel %vm335, %v65, %v100
  %v339 = vsel %vm335, %v66, %v102
  %v340 = vsel %vm335, %v67, %v104
  %v341 = vsel %vm335, %v68, %v106
  %v342 = vsel %vm335, %v69, %v108
  %v343 = vsel %vm335, %v70, %v110
  %v344 = vsel %vm335, %v71, %v112
  %v345 = vsel %vm335, %v72, %v114
  %v346 = vsel %vm335, %v73, %v116
  %v347 = vsel %vm335, %v74, %v118
  %v348 = vsel %vm335, %v75, %v120
  %v349 = vsel %vm335, %v76, %v122
  %v350 = vsel %vm335, %v77, %v124
  %v351 = vsel %vm335, %v78, %v126
  %vm352 = vcmask 261120
  %v353 = vsel %vm352, %v336, %v144
  %v354 = vsel %vm352, %v337, %v146
  %v355 = vsel %vm352, %v338, %v148
  %v356 = vsel %vm352, %v339, %v150
  %v357 = vsel %vm352, %v340, %v152
  %v358 = vsel %vm352, %v341, %v154
  %v359 = vsel %vm352, %v342, %v156
  %v360 = vsel %vm352, %v343, %v158
  %v361 = vsel %vm352, %v344, %v160
  %v362 = vsel %vm352, %v345, %v162
  %v363 = vsel %vm352, %v346, %v164
  %v364 = vsel %vm352, %v347, %v166
  %v365 = vsel %vm352, %v348, %v168
  %v366 = vsel %vm352, %v349, %v170
  %v367 = vsel %vm352, %v350, %v172
  %v368 = vsel %vm352, %v351, %v174
  %vm369 = vcmask 392192
  %v370 = vsel %vm369, %v353, %v192
  %v371 = vsel %vm369, %v354, %v194
  %v372 = vsel %vm369, %v355, %v196
  %v373 = vsel %vm369, %v356, %v198
  %v374 = vsel %vm369, %v357, %v200
  %v375 = vsel %vm369, %v358, %v202
  %v376 = vsel %vm369, %v359, %v204
  %v377 = vsel %vm369, %v360, %v206
  %v378 = vsel %vm369, %v361, %v208
  %v379 = vsel %vm369, %v362, %v210
  %v380 = vsel %vm369, %v363, %v212
  %v381 = vsel %vm369, %v364, %v214
  %v382 = vsel %vm369, %v365, %v216
  %v383 = vsel %vm369, %v366, %v218
  %v384 = vsel %vm369, %v367, %v220
  %v385 = vsel %vm369, %v368, %v222
  %vm386 = vcmask 523264
  %v387 = vsel %vm386, %v370, %v240
  %v388 = vsel %vm386, %v371, %v242
  %v389 = vsel %vm386, %v372, %v244
  %v390 = vsel %vm386, %v373, %v246
  %v391 = vsel %vm386, %v374, %v248
  %v392 = vsel %vm386, %v375, %v250
  %v393 = vsel %vm386, %v376, %v252
  %v394 = vsel %vm386, %v377, %v254
  %v395 = vsel %vm386, %v378, %v256
  %v396 = vsel %vm386, %v379, %v258
  %v397 = vsel %vm386, %v380, %v260
  %v398 = vsel %vm386, %v381, %v262
  %v399 = vsel %vm386, %v382, %v264
  %v400 = vsel %vm386, %v383, %v266
  %v401 = vsel %vm386, %v384, %v268
  %v402 = vsel %vm386, %v385, %v270
  %vm403 = vcmask 654336
  %v404 = vsel %vm403, %v387, %v288
  %v405 = vsel %vm403, %v388, %v290
  %v406 = vsel %vm403, %v389, %v292
  %v407 = vsel %vm403, %v390, %v294
  %v408 = vsel %vm403, %v391, %v296
  %v409 = vsel %vm403, %v392, %v298
  %v410 = vsel %vm403, %v393, %v300
  %v411 = vsel %vm403, %v394, %v302
  %v412 = vsel %vm403, %v395, %v304
  %v413 = vsel %vm403, %v396, %v306
  %v414 = vsel %vm403, %v397, %v308
  %v415 = vsel %vm403, %v398, %v310
  %v416 = vsel %vm403, %v399, %v312
  %v417 = vsel %vm403, %v400, %v314
  %v418 = vsel %vm403, %v401, %v316
  %v419 = vsel %vm403, %v402, %v318
  %v420 = vsub.f32 %v47, %v404
  %v421 = vsub.f32 %v48, %v405
  %v422 = vsub.f32 %v49, %v406
  %v423 = vsub.f32 %v50, %v407
  %v424 = vsub.f32 %v51, %v408
  %v425 = vsub.f32 %v52, %v409
  %v426 = vsub.f32 %v53, %v410
  %v427 = vsub.f32 %v54, %v411
  %v428 = vsub.f32 %v55, %v412
  %v429 = vsub.f32 %v56, %v413
  %v430 = vsub.f32 %v57, %v414
  %v431 = vsub.f32 %v58, %v415
  %v432 = vsub.f32 %v59, %v416
  %v433 = vsub.f32 %v60, %v417
  %v434 = vsub.f32 %v61, %v418
  %v435 = vsub.f32 %v62, %v419
  %v436 = vmul.f32 %v420, %v420
  %v437 = vmul.f32 %v421, %v421
  %v438 = vmul.f32 %v422, %v422
  %v439 = vmul.f32 %v423, %v423
  %v440 = vmul.f32 %v424, %v424
  %v441 = vmul.f32 %v425, %v425
  %v442 = vmul.f32 %v426, %v426
  %v443 = vmul.f32 %v427, %v427
  %v444 = vmul.f32 %v428, %v428
  %v445 = vmul.f32 %v429, %v429
  %v446 = vmul.f32 %v430, %v430
  %v447 = vmul.f32 %v431, %v431
  %v448 = vmul.f32 %v432, %v432
  %v449 = vmul.f32 %v433, %v433
  %v450 = vmul.f32 %v434, %v434
  %v451 = vmul.f32 %v435, %v435
  %v452 = vlaneseq
  %v453 = vshrl.u32 %v452, 7
  %v454 = vadd.s32 %v453, 8
  %v455 = vadd.s32 %v453, 16
  %v456 = vadd.s32 %v453, 24
  %v457 = vadd.s32 %v453, 32
  %v458 = vadd.s32 %v453, 40
  %v459 = vadd.s32 %v453, 48
  %v460 = vadd.s32 %v453, 56
  %v461 = vadd.s32 %v453, 64
  %v462 = vadd.s32 %v453, 72
  %v463 = vadd.s32 %v453, 80
  %v464 = vadd.s32 %v453, 88
  %v465 = vlaneseq
  %v466 = vand.u32 %v465, 127
  %v467 = vmul.u32 %v466, 16
  %vm468 = vcmp.ge.s32.totalorder %v453, %v467
  %vm469 = vcmp.ge.s32.totalorder %v454, %v467
  %vm470 = vcmp.ge.s32.totalorder %v455, %v467
  %vm471 = vcmp.ge.s32.totalorder %v456, %v467
  %vm472 = vcmp.ge.s32.totalorder %v457, %v467
  %vm473 = vcmp.ge.s32.totalorder %v458, %v467
  %vm474 = vcmp.ge.s32.totalorder %v459, %v467
  %vm475 = vcmp.ge.s32.totalorder %v460, %v467
  %vm476 = vcmp.ge.s32.totalorder %v461, %v467
  %vm477 = vcmp.ge.s32.totalorder %v462, %v467
  %vm478 = vcmp.ge.s32.totalorder %v463, %v467
  %vm479 = vcmp.ge.s32.totalorder %v464, %v467
  %v480 = vadd.s32 %v466, 1
  %v481 = vmul.u32 %v480, 16
  %vm482 = vcmp.lt.s32.totalorder %v453, %v481
  %vm483 = vcmp.lt.s32.totalorder %v454, %v481
  %vm484 = vcmp.lt.s32.totalorder %v455, %v481
  %vm485 = vcmp.lt.s32.totalorder %v456, %v481
  %vm486 = vcmp.lt.s32.totalorder %v457, %v481
  %vm487 = vcmp.lt.s32.totalorder %v458, %v481
  %vm488 = vcmp.lt.s32.totalorder %v459, %v481
  %vm489 = vcmp.lt.s32.totalorder %v460, %v481
  %vm490 = vcmp.lt.s32.totalorder %v461, %v481
  %vm491 = vcmp.lt.s32.totalorder %v462, %v481
  %vm492 = vcmp.lt.s32.totalorder %v463, %v481
  %vm493 = vcmp.lt.s32.totalorder %v464, %v481
  %vm494 = vmand %vm468, %vm482
  %vm495 = vmand %vm469, %vm483
  %vm496 = vmand %vm470, %vm484
  %vm497 = vmand %vm471, %vm485
  %vm498 = vmand %vm472, %vm486
  %vm499 = vmand %vm473, %vm487
  %vm500 = vmand %vm474, %vm488
  %vm501 = vmand %vm475, %vm489
  %vm502 = vmand %vm476, %vm490
  %vm503 = vmand %vm477, %vm491
  %vm504 = vmand %vm478, %vm492
  %vm505 = vmand %vm479, %vm493
  %v506 = vsel %vm494, 1, 0
  %v507 = vsel %vm495, 1, 0
  %v508 = vsel %vm496, 1, 0
  %v509 = vsel %vm497, 1, 0
  %v510 = vsel %vm498, 1, 0
  %v511 = vsel %vm499, 1, 0
  %v512 = vsel %vm500, 1, 0
  %v513 = vsel %vm501, 1, 0
  %v514 = vsel %vm502, 1, 0
  %v515 = vsel %vm503, 1, 0
  %v516 = vsel %vm504, 1, 0
  %v517 = vsel %vm505, 1, 0
  %v518 = vcvt.s32.f32 %v506
  %v519 = vcvt.s32.f32 %v507
  %v520 = vcvt.s32.f32 %v508
  %v521 = vcvt.s32.f32 %v509
  %v522 = vcvt.s32.f32 %v510
  %v523 = vcvt.s32.f32 %v511
  %v524 = vcvt.s32.f32 %v512
  %v525 = vcvt.s32.f32 %v513
  %v526 = vcvt.s32.f32 %v514
  %v527 = vcvt.s32.f32 %v515
  %v528 = vcvt.s32.f32 %v516
  %v529 = vcvt.s32.f32 %v517
  %v530 = vpack.c.bf16 %v519, %v518
  %v531 = vpack.c.bf16 %v521, %v520
  %v532 = vpack.c.bf16 %v523, %v522
  %v533 = vpack.c.bf16 %v525, %v524
  %v534 = vpack.c.bf16 %v527, %v526
  %v535 = vpack.c.bf16 %v529, %v528
  %v536 = vpack.c.bf16 %v437, %v436
  %v537 = vpack.c.bf16 %v439, %v438
  %v538 = vpack.c.bf16 %v441, %v440
  %v539 = vpack.c.bf16 %v443, %v442
  %v540 = vpack.c.bf16 %v445, %v444
  %v541 = vpack.c.bf16 %v447, %v446
  %v542 = vpack.c.bf16 %v449, %v448
  %v543 = vpack.c.bf16 %v451, %v450
  %v544 = vunpack.c.l.bf16 %v536
  %v545 = vunpack.c.h.bf16 %v536
  %v546 = vunpack.c.l.bf16 %v537
  %v547 = vunpack.c.h.bf16 %v537
  %v548 = vunpack.c.l.bf16 %v538
  %v549 = vunpack.c.h.bf16 %v538
  %v550 = vunpack.c.l.bf16 %v539
  %v551 = vunpack.c.h.bf16 %v539
  %v552 = vunpack.c.l.bf16 %v540
  %v553 = vunpack.c.h.bf16 %v540
  %v554 = vunpack.c.l.bf16 %v541
  %v555 = vunpack.c.h.bf16 %v541
  %v556 = vunpack.c.l.bf16 %v542
  %v557 = vunpack.c.h.bf16 %v542
  %v558 = vunpack.c.l.bf16 %v543
  %v559 = vunpack.c.h.bf16 %v543
  %v560 = vsub.f32 %v436, %v544
  %v561 = vsub.f32 %v437, %v545
  %v562 = vsub.f32 %v438, %v546
  %v563 = vsub.f32 %v439, %v547
  %v564 = vsub.f32 %v440, %v548
  %v565 = vsub.f32 %v441, %v549
  %v566 = vsub.f32 %v442, %v550
  %v567 = vsub.f32 %v443, %v551
  %v568 = vsub.f32 %v444, %v552
  %v569 = vsub.f32 %v445, %v553
  %v570 = vsub.f32 %v446, %v554
  %v571 = vsub.f32 %v447, %v555
  %v572 = vsub.f32 %v448, %v556
  %v573 = vsub.f32 %v449, %v557
  %v574 = vsub.f32 %v450, %v558
  %v575 = vsub.f32 %v451, %v559
  %v576 = vpack.c.bf16 %v561, %v560
  %v577 = vpack.c.bf16 %v563, %v562
  %v578 = vpack.c.bf16 %v565, %v564
  %v579 = vpack.c.bf16 %v567, %v566
  %v580 = vpack.c.bf16 %v569, %v568
  %v581 = vpack.c.bf16 %v571, %v570
  %v582 = vpack.c.bf16 %v573, %v572
  %v583 = vpack.c.bf16 %v575, %v574
  %v584 = vunpack.c.l.bf16 %v576
  %v585 = vunpack.c.h.bf16 %v576
  %v586 = vunpack.c.l.bf16 %v577
  %v587 = vunpack.c.h.bf16 %v577
  %v588 = vunpack.c.l.bf16 %v578
  %v589 = vunpack.c.h.bf16 %v578
  %v590 = vunpack.c.l.bf16 %v579
  %v591 = vunpack.c.h.bf16 %v579
  %v592 = vunpack.c.l.bf16 %v580
  %v593 = vunpack.c.h.bf16 %v580
  %v594 = vunpack.c.l.bf16 %v581
  %v595 = vunpack.c.h.bf16 %v581
  %v596 = vunpack.c.l.bf16 %v582
  %v597 = vunpack.c.h.bf16 %v582
  %v598 = vunpack.c.l.bf16 %v583
  %v599 = vunpack.c.h.bf16 %v583
  %v600 = vsub.f32 %v560, %v584
  %v601 = vsub.f32 %v561, %v585
  %v602 = vsub.f32 %v562, %v586
  %v603 = vsub.f32 %v563, %v587
  %v604 = vsub.f32 %v564, %v588
  %v605 = vsub.f32 %v565, %v589
  %v606 = vsub.f32 %v566, %v590
  %v607 = vsub.f32 %v567, %v591
  %v608 = vsub.f32 %v568, %v592
  %v609 = vsub.f32 %v569, %v593
  %v610 = vsub.f32 %v570, %v594
  %v611 = vsub.f32 %v571, %v595
  %v612 = vsub.f32 %v572, %v596
  %v613 = vsub.f32 %v573, %v597
  %v614 = vsub.f32 %v574, %v598
  %v615 = vsub.f32 %v575, %v599
  %v616 = vpack.c.bf16 %v601, %v600
  %v617 = vpack.c.bf16 %v603, %v602
  %v618 = vpack.c.bf16 %v605, %v604
  %v619 = vpack.c.bf16 %v607, %v606
  %v620 = vpack.c.bf16 %v609, %v608
  %v621 = vpack.c.bf16 %v611, %v610
  %v622 = vpack.c.bf16 %v613, %v612
  %v623 = vpack.c.bf16 %v615, %v614
  %vm624 = vcmask 785408
  %v626 = vsel %vm624, %v576, 0
  %v629 = vsel %vm624, %v577, 0
  %v632 = vsel %vm624, %v578, 0
  %v635 = vsel %vm624, %v579, 0
  %v638 = vsel %vm624, %v580, 0
  %v641 = vsel %vm624, %v581, 0
  %v644 = vsel %vm624, %v582, 0
  %v647 = vsel %vm624, %v583, 0
  %649 = vmatprep.subr.bf16.mxu0 0
  %650 = vmatpush1.bf16.msra.mxu0 %v530
  %651 = vmatprep.subr.bf16.mxu0 0
  %652 = vmatpush1.bf16.msra.mxu0 %v531
  %653 = vmatprep.subr.bf16.mxu0 0
  %654 = vmatpush1.bf16.msra.mxu0 %v532
  %655 = vmatprep.subr.bf16.mxu0 0
  %656 = vmatpush1.bf16.msra.mxu0 %v533
  %657 = vmatprep.subr.bf16.mxu0 0
  %658 = vmatpush1.bf16.msra.mxu0 %v534
  %659 = vmatprep.subr.bf16.mxu0 0
  %660 = vmatpush1.bf16.msra.mxu0 %v535
  %661 = vmatprep.subr.bf16.mxu0 0
  %662 = vmatpush1.bf16.msra.mxu0 0
  %663 = vmatprep.subr.bf16.mxu0 0
  %664 = vmatpush1.bf16.msra.mxu0 0
  %665 = vmatprep.subr.bf16.mxu0 0
  %666 = vmatpush1.bf16.msra.mxu0 0
  %667 = vmatprep.subr.bf16.mxu0 0
  %668 = vmatpush1.bf16.msra.mxu0 0
  %669 = vmatprep.subr.bf16.mxu0 0
  %670 = vmatpush1.bf16.msra.mxu0 0
  %671 = vmatprep.subr.bf16.mxu0 0
  %672 = vmatpush1.bf16.msra.mxu0 0
  %673 = vmatprep.subr.bf16.mxu0 0
  %674 = vmatpush1.bf16.msra.mxu0 0
  %675 = vmatprep.subr.bf16.mxu0 0
  %676 = vmatpush1.bf16.msra.mxu0 0
  %677 = vmatprep.subr.bf16.mxu0 0
  %678 = vmatpush1.bf16.msra.mxu0 0
  %679 = vmatprep.subr.bf16.mxu0 0
  %680 = vmatpush1.bf16.msra.mxu0 0
  %681 = vmatprep.mubr.bf16.mxu0 0
  %682 = vmatmul.mubr.bf16.gmra.mrb[0].mxu0 %v626
  %v683 = vpop.f32.mrb[0].mxu0
  %v684 = vadd.f32 0.0, %v683
  %v685 = vpop.f32.mrb[0].mxu0
  %v686 = vpop.f32.mrb[0].mxu0
  %v687 = vadd.f32 0.0, %v686
  %v688 = vpop.f32.mrb[0].mxu0
  %689 = vmatprep.mubr.bf16.mxu0 0
  %690 = vmatmul.mubr.bf16.gmra.mrb[0].mxu0 %v629
  %v691 = vpop.f32.mrb[0].mxu0
  %v692 = vadd.f32 0.0, %v691
  %v693 = vpop.f32.mrb[0].mxu0
  %v694 = vpop.f32.mrb[0].mxu0
  %v695 = vadd.f32 0.0, %v694
  %v696 = vpop.f32.mrb[0].mxu0
  %697 = vmatprep.mubr.bf16.mxu0 0
  %698 = vmatmul.mubr.bf16.gmra.mrb[0].mxu0 %v632
  %v699 = vpop.f32.mrb[0].mxu0
  %v700 = vadd.f32 0.0, %v699
  %v701 = vpop.f32.mrb[0].mxu0
  %v702 = vpop.f32.mrb[0].mxu0
  %v703 = vadd.f32 0.0, %v702
  %v704 = vpop.f32.mrb[0].mxu0
  %705 = vmatprep.mubr.bf16.mxu0 0
  %706 = vmatmul.mubr.bf16.gmra.mrb[0].mxu0 %v635
  %v707 = vpop.f32.mrb[0].mxu0
  %v708 = vadd.f32 0.0, %v707
  %v709 = vpop.f32.mrb[0].mxu0
  %v710 = vpop.f32.mrb[0].mxu0
  %v711 = vadd.f32 0.0, %v710
  %v712 = vpop.f32.mrb[0].mxu0
  %713 = vmatprep.mubr.bf16.mxu0 0
  %714 = vmatmul.mubr.bf16.gmra.mrb[0].mxu0 %v638
  %v715 = vpop.f32.mrb[0].mxu0
  %v716 = vadd.f32 0.0, %v715
  %v717 = vpop.f32.mrb[0].mxu0
  %v718 = vpop.f32.mrb[0].mxu0
  %v719 = vadd.f32 0.0, %v718
  %v720 = vpop.f32.mrb[0].mxu0
  %721 = vmatprep.mubr.bf16.mxu0 0
  %722 = vmatmul.mubr.bf16.gmra.mrb[0].mxu0 %v641
  %v723 = vpop.f32.mrb[0].mxu0
  %v724 = vadd.f32 0.0, %v723
  %v725 = vpop.f32.mrb[0].mxu0
  %v726 = vpop.f32.mrb[0].mxu0
  %v727 = vadd.f32 0.0, %v726
  %v728 = vpop.f32.mrb[0].mxu0
  %729 = vmatprep.mubr.bf16.mxu0 0
  %730 = vmatmul.mubr.bf16.gmra.mrb[0].mxu0 %v644
  %v731 = vpop.f32.mrb[0].mxu0
  %v732 = vadd.f32 0.0, %v731
  %v733 = vpop.f32.mrb[0].mxu0
  %v734 = vpop.f32.mrb[0].mxu0
  %v735 = vadd.f32 0.0, %v734
  %v736 = vpop.f32.mrb[0].mxu0
  %737 = vmatprep.mubr.bf16.mxu0 0
  %738 = vmatmul.mubr.bf16.gmra.mrb[0].mxu0 %v647
  %v739 = vpop.f32.mrb[0].mxu0
  %v740 = vadd.f32 0.0, %v739
  %v741 = vpop.f32.mrb[0].mxu0
  %v742 = vpop.f32.mrb[0].mxu0
  %v743 = vadd.f32 0.0, %v742
  %v744 = vpop.f32.mrb[0].mxu0
  %745 = vdwg.mxu0
  %v747 = vsel %vm624, %v536, 0
  %v750 = vsel %vm624, %v537, 0
  %v753 = vsel %vm624, %v538, 0
  %v756 = vsel %vm624, %v539, 0
  %v759 = vsel %vm624, %v540, 0
  %v762 = vsel %vm624, %v541, 0
  %v765 = vsel %vm624, %v542, 0
  %v768 = vsel %vm624, %v543, 0
  %770 = vmatprep.subr.bf16.mxu0 0
  %771 = vmatpush1.bf16.msra.mxu0 %v530
  %772 = vmatprep.subr.bf16.mxu0 0
  %773 = vmatpush1.bf16.msra.mxu0 %v531
  %774 = vmatprep.subr.bf16.mxu0 0
  %775 = vmatpush1.bf16.msra.mxu0 %v532
  %776 = vmatprep.subr.bf16.mxu0 0
  %777 = vmatpush1.bf16.msra.mxu0 %v533
  %778 = vmatprep.subr.bf16.mxu0 0
  %779 = vmatpush1.bf16.msra.mxu0 %v534
  %780 = vmatprep.subr.bf16.mxu0 0
  %781 = vmatpush1.bf16.msra.mxu0 %v535
  %782 = vmatprep.subr.bf16.mxu0 0
  %783 = vmatpush1.bf16.msra.mxu0 0
  %784 = vmatprep.subr.bf16.mxu0 0
  %785 = vmatpush1.bf16.msra.mxu0 0
  %786 = vmatprep.subr.bf16.mxu0 0
  %787 = vmatpush1.bf16.msra.mxu0 0
  %788 = vmatprep.subr.bf16.mxu0 0
  %789 = vmatpush1.bf16.msra.mxu0 0
  %790 = vmatprep.subr.bf16.mxu0 0
  %791 = vmatpush1.bf16.msra.mxu0 0
  %792 = vmatprep.subr.bf16.mxu0 0
  %793 = vmatpush1.bf16.msra.mxu0 0
  %794 = vmatprep.subr.bf16.mxu0 0
  %795 = vmatpush1.bf16.msra.mxu0 0
  %796 = vmatprep.subr.bf16.mxu0 0
  %797 = vmatpush1.bf16.msra.mxu0 0
  %798 = vmatprep.subr.bf16.mxu0 0
  %799 = vmatpush1.bf16.msra.mxu0 0
  %800 = vmatprep.subr.bf16.mxu0 0
  %801 = vmatpush1.bf16.msra.mxu0 0
  %802 = vmatprep.mubr.bf16.mxu0 0
  %803 = vmatmul.mubr.bf16.gmra.mrb[0].mxu0 %v747
  %v804 = vpop.f32.mrb[0].mxu0
  %v805 = vadd.f32 %v684, %v804
  %v806 = vpop.f32.mrb[0].mxu0
  %v807 = vpop.f32.mrb[0].mxu0
  %v808 = vadd.f32 %v687, %v807
  %v809 = vpop.f32.mrb[0].mxu0
  %810 = vmatprep.mubr.bf16.mxu0 0
  %811 = vmatmul.mubr.bf16.gmra.mrb[0].mxu0 %v750
  %v812 = vpop.f32.mrb[0].mxu0
  %v813 = vadd.f32 %v692, %v812
  %v814 = vpop.f32.mrb[0].mxu0
  %v815 = vpop.f32.mrb[0].mxu0
  %v816 = vadd.f32 %v695, %v815
  %v817 = vpop.f32.mrb[0].mxu0
  %818 = vmatprep.mubr.bf16.mxu0 0
  %819 = vmatmul.mubr.bf16.gmra.mrb[0].mxu0 %v753
  %v820 = vpop.f32.mrb[0].mxu0
  %v821 = vadd.f32 %v700, %v820
  %v822 = vpop.f32.mrb[0].mxu0
  %v823 = vpop.f32.mrb[0].mxu0
  %v824 = vadd.f32 %v703, %v823
  %v825 = vpop.f32.mrb[0].mxu0
  %826 = vmatprep.mubr.bf16.mxu0 0
  %827 = vmatmul.mubr.bf16.gmra.mrb[0].mxu0 %v756
  %v828 = vpop.f32.mrb[0].mxu0
  %v829 = vadd.f32 %v708, %v828
  %v830 = vpop.f32.mrb[0].mxu0
  %v831 = vpop.f32.mrb[0].mxu0
  %v832 = vadd.f32 %v711, %v831
  %v833 = vpop.f32.mrb[0].mxu0
  %834 = vmatprep.mubr.bf16.mxu0 0
  %835 = vmatmul.mubr.bf16.gmra.mrb[0].mxu0 %v759
  %v836 = vpop.f32.mrb[0].mxu0
  %v837 = vadd.f32 %v716, %v836
  %v838 = vpop.f32.mrb[0].mxu0
  %v839 = vpop.f32.mrb[0].mxu0
  %v840 = vadd.f32 %v719, %v839
  %v841 = vpop.f32.mrb[0].mxu0
  %842 = vmatprep.mubr.bf16.mxu0 0
  %843 = vmatmul.mubr.bf16.gmra.mrb[0].mxu0 %v762
  %v844 = vpop.f32.mrb[0].mxu0
  %v845 = vadd.f32 %v724, %v844
  %v846 = vpop.f32.mrb[0].mxu0
  %v847 = vpop.f32.mrb[0].mxu0
  %v848 = vadd.f32 %v727, %v847
  %v849 = vpop.f32.mrb[0].mxu0
  %850 = vmatprep.mubr.bf16.mxu0 0
  %851 = vmatmul.mubr.bf16.gmra.mrb[0].mxu0 %v765
  %v852 = vpop.f32.mrb[0].mxu0
  %v853 = vadd.f32 %v732, %v852
  %v854 = vpop.f32.mrb[0].mxu0
  %v855 = vpop.f32.mrb[0].mxu0
  %v856 = vadd.f32 %v735, %v855
  %v857 = vpop.f32.mrb[0].mxu0
  %858 = vmatprep.mubr.bf16.mxu0 0
  %859 = vmatmul.mubr.bf16.gmra.mrb[0].mxu0 %v768
  %v860 = vpop.f32.mrb[0].mxu0
  %v861 = vadd.f32 %v740, %v860
  %v862 = vpop.f32.mrb[0].mxu0
  %v863 = vpop.f32.mrb[0].mxu0
  %v864 = vadd.f32 %v743, %v863
  %v865 = vpop.f32.mrb[0].mxu0
  %866 = vdwg.mxu0
  %v868 = vsel %vm624, %v616, 0
  %v871 = vsel %vm624, %v617, 0
  %v874 = vsel %vm624, %v618, 0
  %v877 = vsel %vm624, %v619, 0
  %v880 = vsel %vm624, %v620, 0
  %v883 = vsel %vm624, %v621, 0
  %v886 = vsel %vm624, %v622, 0
  %v889 = vsel %vm624, %v623, 0
  %891 = vmatprep.subr.bf16.mxu0 0
  %892 = vmatpush1.bf16.msra.mxu0 %v530
  %893 = vmatprep.subr.bf16.mxu0 0
  %894 = vmatpush1.bf16.msra.mxu0 %v531
  %895 = vmatprep.subr.bf16.mxu0 0
  %896 = vmatpush1.bf16.msra.mxu0 %v532
  %897 = vmatprep.subr.bf16.mxu0 0
  %898 = vmatpush1.bf16.msra.mxu0 %v533
  %899 = vmatprep.subr.bf16.mxu0 0
  %900 = vmatpush1.bf16.msra.mxu0 %v534
  %901 = vmatprep.subr.bf16.mxu0 0
  %902 = vmatpush1.bf16.msra.mxu0 %v535
  %903 = vmatprep.subr.bf16.mxu0 0
  %904 = vmatpush1.bf16.msra.mxu0 0
  %905 = vmatprep.subr.bf16.mxu0 0
  %906 = vmatpush1.bf16.msra.mxu0 0
  %907 = vmatprep.subr.bf16.mxu0 0
  %908 = vmatpush1.bf16.msra.mxu0 0
  %909 = vmatprep.subr.bf16.mxu0 0
  %910 = vmatpush1.bf16.msra.mxu0 0
  %911 = vmatprep.subr.bf16.mxu0 0
  %912 = vmatpush1.bf16.msra.mxu0 0
  %913 = vmatprep.subr.bf16.mxu0 0
  %914 = vmatpush1.bf16.msra.mxu0 0
  %915 = vmatprep.subr.bf16.mxu0 0
  %916 = vmatpush1.bf16.msra.mxu0 0
  %917 = vmatprep.subr.bf16.mxu0 0
  %918 = vmatpush1.bf16.msra.mxu0 0
  %919 = vmatprep.subr.bf16.mxu0 0
  %920 = vmatpush1.bf16.msra.mxu0 0
  %921 = vmatprep.subr.bf16.mxu0 0
  %922 = vmatpush1.bf16.msra.mxu0 0
  %923 = vmatprep.mubr.bf16.mxu0 0
  %924 = vmatmul.mubr.bf16.gmra.mrb[0].mxu0 %v868
  %v925 = vpop.f32.mrb[0].mxu0
  %v926 = vadd.f32 0.0, %v925
  %v927 = vpop.f32.mrb[0].mxu0
  %v928 = vpop.f32.mrb[0].mxu0
  %v929 = vadd.f32 0.0, %v928
  %v930 = vpop.f32.mrb[0].mxu0
  %931 = vmatprep.mubr.bf16.mxu0 0
  %932 = vmatmul.mubr.bf16.gmra.mrb[0].mxu0 %v871
  %v933 = vpop.f32.mrb[0].mxu0
  %v934 = vadd.f32 0.0, %v933
  %v935 = vpop.f32.mrb[0].mxu0
  %v936 = vpop.f32.mrb[0].mxu0
  %v937 = vadd.f32 0.0, %v936
  %v938 = vpop.f32.mrb[0].mxu0
  %939 = vmatprep.mubr.bf16.mxu0 0
  %940 = vmatmul.mubr.bf16.gmra.mrb[0].mxu0 %v874
  %v941 = vpop.f32.mrb[0].mxu0
  %v942 = vadd.f32 0.0, %v941
  %v943 = vpop.f32.mrb[0].mxu0
  %v944 = vpop.f32.mrb[0].mxu0
  %v945 = vadd.f32 0.0, %v944
  %v946 = vpop.f32.mrb[0].mxu0
  %947 = vmatprep.mubr.bf16.mxu0 0
  %948 = vmatmul.mubr.bf16.gmra.mrb[0].mxu0 %v877
  %v949 = vpop.f32.mrb[0].mxu0
  %v950 = vadd.f32 0.0, %v949
  %v951 = vpop.f32.mrb[0].mxu0
  %v952 = vpop.f32.mrb[0].mxu0
  %v953 = vadd.f32 0.0, %v952
  %v954 = vpop.f32.mrb[0].mxu0
  %955 = vmatprep.mubr.bf16.mxu0 0
  %956 = vmatmul.mubr.bf16.gmra.mrb[0].mxu0 %v880
  %v957 = vpop.f32.mrb[0].mxu0
  %v958 = vadd.f32 0.0, %v957
  %v959 = vpop.f32.mrb[0].mxu0
  %v960 = vpop.f32.mrb[0].mxu0
  %v961 = vadd.f32 0.0, %v960
  %v962 = vpop.f32.mrb[0].mxu0
  %963 = vmatprep.mubr.bf16.mxu0 0
  %964 = vmatmul.mubr.bf16.gmra.mrb[0].mxu0 %v883
  %v965 = vpop.f32.mrb[0].mxu0
  %v966 = vadd.f32 0.0, %v965
  %v967 = vpop.f32.mrb[0].mxu0
  %v968 = vpop.f32.mrb[0].mxu0
  %v969 = vadd.f32 0.0, %v968
  %v970 = vpop.f32.mrb[0].mxu0
  %971 = vmatprep.mubr.bf16.mxu0 0
  %972 = vmatmul.mubr.bf16.gmra.mrb[0].mxu0 %v886
  %v973 = vpop.f32.mrb[0].mxu0
  %v974 = vadd.f32 0.0, %v973
  %v975 = vpop.f32.mrb[0].mxu0
  %v976 = vpop.f32.mrb[0].mxu0
  %v977 = vadd.f32 0.0, %v976
  %v978 = vpop.f32.mrb[0].mxu0
  %979 = vmatprep.mubr.bf16.mxu0 0
  %980 = vmatmul.mubr.bf16.gmra.mrb[0].mxu0 %v889
  %v981 = vpop.f32.mrb[0].mxu0
  %v982 = vadd.f32 0.0, %v981
  %v983 = vpop.f32.mrb[0].mxu0
  %v984 = vpop.f32.mrb[0].mxu0
  %v985 = vadd.f32 0.0, %v984
  %v986 = vpop.f32.mrb[0].mxu0
  %987 = vdwg.mxu0
  %v988 = vadd.f32 %v805, %v926
  %v989 = vadd.f32 %v808, %v929
  %v990 = vadd.f32 %v813, %v934
  %v991 = vadd.f32 %v816, %v937
  %v992 = vadd.f32 %v821, %v942
  %v993 = vadd.f32 %v824, %v945
  %v994 = vadd.f32 %v829, %v950
  %v995 = vadd.f32 %v832, %v953
  %v996 = vadd.f32 %v837, %v958
  %v997 = vadd.f32 %v840, %v961
  %v998 = vadd.f32 %v845, %v966
  %v999 = vadd.f32 %v848, %v969
  %v1000 = vadd.f32 %v853, %v974
  %v1001 = vadd.f32 %v856, %v977
  %v1002 = vadd.f32 %v861, %v982
  %v1003 = vadd.f32 %v864, %v985
  %1004 = vxpose.xlu0.b32.start [1/16] %v988, 128
  %1005 = vxpose.xlu0.b32.cont [2/16] %v989, 128
  %1006 = vxpose.xlu0.b32.cont [3/16] %v990, 128
  %1007 = vxpose.xlu0.b32.cont [4/16] %v991, 128
  %1008 = vxpose.xlu0.b32.cont [5/16] %v992, 128
  %1009 = vxpose.xlu0.b32.cont [6/16] %v993, 128
  %1010 = vxpose.xlu0.b32.cont [7/16] %v994, 128
  %1011 = vxpose.xlu0.b32.cont [8/16] %v995, 128
  %1012 = vxpose.xlu0.b32.cont [9/16] %v996, 128
  %1013 = vxpose.xlu0.b32.cont [10/16] %v997, 128
  %1014 = vxpose.xlu0.b32.cont [11/16] %v998, 128
  %1015 = vxpose.xlu0.b32.cont [12/16] %v999, 128
  %1016 = vxpose.xlu0.b32.cont [13/16] %v1000, 128
  %1017 = vxpose.xlu0.b32.cont [14/16] %v1001, 128
  %1018 = vxpose.xlu0.b32.cont [15/16] %v1002, 128
  %1019 = vxpose.xlu0.b32.end [16/16] %v1003, 128
  %v1020 = vpop.trf.xlu0
  %v1021 = vpop.trf.xlu0
  %v1022 = vpop.trf.xlu0
  %v1023 = vpop.trf.xlu0
  %v1024 = vpop.trf.xlu0
  %v1025 = vpop.trf.xlu0
  %v1026 = vpop.trf.xlu0
  %v1027 = vpop.trf.xlu0
  %v1028 = vpop.trf.xlu0
  %v1029 = vpop.trf.xlu0
  %v1030 = vpop.trf.xlu0
  %v1031 = vpop.trf.xlu0
  %v1032 = vpop.trf.xlu0
  %v1033 = vpop.trf.xlu0
  %v1034 = vpop.trf.xlu0
  %v1035 = vpop.trf.xlu0
  %v1037 = vrot.slane %v1020, 7
  %vm1039 = vcmp.lt.f32.partialorder %v1020, %v1037
  %v1040 = vsel %vm1039, %v1020, %v1037
  %v1042 = vrot.slane %v35, 7
  %v1044 = vsel %vm1039, %v35, %v1042
  %v1046 = vrot.slane %v1040, 7
  %vm1048 = vcmp.lt.f32.partialorder %v1020, %v1046
  %v1049 = vsel %vm1048, %v1020, %v1046
  %v1051 = vrot.slane %v1044, 7
  %v1053 = vsel %vm1048, %v35, %v1051
  %v1055 = vrot.slane %v1049, 7
  %vm1057 = vcmp.lt.f32.partialorder %v1020, %v1055
  %v1058 = vsel %vm1057, %v1020, %v1055
  %v1060 = vrot.slane %v1053, 7
  %v1062 = vsel %vm1057, %v35, %v1060
  %v1064 = vrot.slane %v1058, 7
  %vm1066 = vcmp.lt.f32.partialorder %v1020, %v1064
  %v1067 = vsel %vm1066, %v1020, %v1064
  %v1069 = vrot.slane %v1062, 7
  %v1071 = vsel %vm1066, %v35, %v1069
  %v1073 = vrot.slane %v1067, 7
  %vm1075 = vcmp.lt.f32.partialorder %v1020, %v1073
  %v1076 = vsel %vm1075, %v1020, %v1073
  %v1078 = vrot.slane %v1071, 7
  %v1080 = vsel %vm1075, %v35, %v1078
  %v1081 = vadd.f32 %v1080, 1e-10
  %v1082 = vlog2.pop %v1081
  %v1083 = vmul.f32 %v1082, 0.6931472
  %v1084 = vsub.f32 0.0, %v1083
  %v1085 = vadd.f32 %v46, %v1084
  %v1086 = vadd.f32 %v1085, %v1076
  %s1087 = smul.u32 0, 128
  %v1088 = vstv %s1087
  %v1089 = vadd.s32 %v466, %v1088
  %vm1090 = vcmp.lt.s32.totalorder %v1089, 4
  %v1091 = vsel %vm1090, %v1086, 0.0
  %1092 = vst [vmem:[%s3 - $0x5] sm:$0x20] %v1091
  // Predicated region
  $region14: #{mnll_trajectory_loss.1} parent=0 // pred_check
    _
  $region15: #{mnll_trajectory_loss.1} parent=0 // pred_check_branch
    %1094 = sbr.rel (0) target = $region17
  $region16: #{mnll_trajectory_loss.1} parent=0 // pred_region
    _
  $region17: #{mnll_trajectory_loss.1} parent=0 // pred_fallthru
    _
  // Predicated region
  $region18: #{mnll_trajectory_loss.1} parent=0 // pred_check
    _
  $region19: #{mnll_trajectory_loss.1} parent=0 // pred_check_branch
    %1096 = sbr.rel (0) target = $region21
  $region20: #{mnll_trajectory_loss.1} parent=0 // pred_region
    _
  $region21: #{mnll_trajectory_loss.1} parent=0 // pred_fallthru
    _

</llo_original>
